<compile_context>
chip_gen: v5e
topology: v5e:2x2
jax: 0.10.0
libtpu: 0.0.40
codegen_flags: <defaults>
</compile_context>

<pallas_src>
import math
import functools

import jax
import jax.numpy as jnp
from jax import lax
from jax.experimental import pallas as pl
from jax.experimental.pallas import tpu as pltpu

_LANES = 128  # vreg minor (lane) width; m/l scratch values replicated across it


def _rmsnorm(x, w, eps=1e-6):
    """RMSNorm in f32; rsqrt (EUP) instead of sqrt + divide (VALU)."""
    xf = x.astype(jnp.float32)
    inv = lax.rsqrt(jnp.mean(xf * xf, axis=-1, keepdims=True) + eps)
    return (xf * inv) * w.astype(jnp.float32)


def _vmem_capacity_bytes():
    try:
        return int(pltpu.get_tpu_info().vmem_capacity_bytes)
    except Exception:
        return 64 << 20  # conservative fallback: v7x per-TensorCore capacity


def _vmem_limit(need_bytes, cap_bytes):
    # Clamp the scoped-VMEM request between the 32 MiB default and capacity - 8 MiB,
    # so it is legal on v7x (64 MiB/TC) as well as the 128 MiB chips (v5e/v6e).
    upper = max(32 << 20, cap_bytes - (8 << 20))
    return int(min(max(int(need_bytes), 32 << 20), upper))


# --------------------------------------------------------------------------------------
# Pass 1: RMSNorm1 + QKV projection (q pre-scaled by 1/sqrt(d_head))
# --------------------------------------------------------------------------------------
def _qkv_kernel(x_ref, ln1_ref, wqkv_ref, q_ref, k_ref, v_ref, *, d_head, compute_dtype):
    x = x_ref[...]                                                     # (tq, D)
    D = x.shape[-1]
    h = _rmsnorm(x, ln1_ref[...]).astype(compute_dtype)
    qkv = jnp.dot(h, wqkv_ref[...], preferred_element_type=jnp.float32)   # (tq, 3D) f32
    scale = 1.0 / math.sqrt(d_head)
    # fold the attention scale into q (N*D multiplies here instead of H*N^2 later)
    q_ref[...] = (qkv[:, 0 * D:1 * D] * scale).astype(q_ref.dtype)
    k_ref[...] = qkv[:, 1 * D:2 * D].astype(k_ref.dtype)
    v_ref[...] = qkv[:, 2 * D:3 * D].astype(v_ref.dtype)


# --------------------------------------------------------------------------------------
# Pass 2: flash attention (online softmax over KV tiles) + out-proj + residual
#         (optionally fused with RMSNorm2 + FFN for small models)
# --------------------------------------------------------------------------------------
def _attn_kernel(x_ref, q_ref, k_ref, v_ref, wo_ref, *rest, n_heads, d_head,
                 compute_dtype, fuse_ffn, approx_recip, gelu_approx):
    if fuse_ffn:
        ln2_ref, w1_ref, w2_ref, o_ref, m_ref, l_ref, acc_ref = rest
    else:
        o_ref, m_ref, l_ref, acc_ref = rest

    kv = pl.program_id(2)
    last_kv = pl.num_programs(2) - 1
    bf16_exp = jnp.dtype(compute_dtype) == jnp.dtype(jnp.bfloat16)

    @pl.when(kv == 0)
    def _init():
        m_ref[...] = jnp.full_like(m_ref, -jnp.inf)
        l_ref[...] = jnp.zeros_like(l_ref)
        acc_ref[...] = jnp.zeros_like(acc_ref)

    q = q_ref[...]          # (tq,  D) compute dtype, already scaled by 1/sqrt(d_head)
    k = k_ref[...]          # (tkv, D)
    v = v_ref[...]          # (tkv, D)
    tq = q.shape[0]

    # Unrolled loop over heads; last-dim slices (no (H, N, dh) transposes).
    alpha_parts = []
    pv_parts = []
    for h in range(n_heads):
        hs = slice(h * d_head, (h + 1) * d_head)
        # scores: q_h (tq, dh) . k_h (tkv, dh)^T -> (tq, tkv), f32 accumulation
        s = lax.dot_general(q[:, hs], k[:, hs],
                            dimension_numbers=(((1,), (1,)), ((), ())),
                            preferred_element_type=jnp.float32)
        m_prev = m_ref[h]                                    # (tq, 128) lane-replicated
        m_new = jnp.maximum(m_prev, jnp.max(s, axis=-1, keepdims=True))
        alpha = jnp.exp(m_prev - m_new)                      # (tq, 128) f32
        z = s - m_new[:, :1]                                 # (tq, tkv)
        if bf16_exp:
            # bf16 exp: EUP is the binding unit of the KV loop at d_head<=64 (v6e/v7x).
            p = jnp.exp(z.astype(jnp.bfloat16))
            row_sum = jnp.sum(p.astype(jnp.float32), axis=-1, keepdims=True)
            pv = jnp.dot(p, v[:, hs], preferred_element_type=jnp.float32)
        else:
            p = jnp.exp(z)
            row_sum = jnp.sum(p, axis=-1, keepdims=True)
            pv = jnp.dot(p.astype(compute_dtype), v[:, hs],
                         preferred_element_type=jnp.float32)
        # full-width (tq, 128) unmasked stores for the running max / denominator
        l_ref[h] = alpha * l_ref[h] + row_sum
        m_ref[h] = m_new
        alpha_parts.append(jnp.broadcast_to(alpha[:, :1], (tq, d_head)))
        pv_parts.append(pv)

    # single lane-dense (tq, D) read-modify-write of the context accumulator
    alpha_full = jnp.concatenate(alpha_parts, axis=-1)       # (tq, D)
    pv_full = jnp.concatenate(pv_parts, axis=-1)             # (tq, D) f32
    acc_ref[...] = alpha_full * acc_ref[...] + pv_full

    @pl.when(kv == last_kv)
    def _finalize():
        # vectorized normalization: one reciprocal per head, one full-width multiply
        inv_parts = []
        for h in range(n_heads):
            inv = pl.reciprocal(l_ref[h][:, :1], approx=approx_recip)   # (tq, 1)
            inv_parts.append(jnp.broadcast_to(inv, (tq, d_head)))
        inv_full = jnp.concatenate(inv_parts, axis=-1)                  # (tq, D)
        ctx = acc_ref[...] * inv_full                                   # (tq, D) f32

        attn_out = jnp.dot(ctx.astype(compute_dtype), wo_ref[...],
                           preferred_element_type=jnp.float32)
        x1 = x_ref[...].astype(jnp.float32) + attn_out                  # residual 1

        if fuse_ffn:
            h2 = _rmsnorm(x1, ln2_ref[...]).astype(compute_dtype)
            f1 = jnp.dot(h2, w1_ref[...], preferred_element_type=jnp.float32)
            # TODO(synk): gelu_approx=True (tanh -> EUP slot) is faster on v5e; exact
            #             erf kept by default for parity with PyTorch F.gelu.
            g = jax.nn.gelu(f1, approximate=gelu_approx).astype(compute_dtype)
            f2 = jnp.dot(g, w2_ref[...], preferred_element_type=jnp.float32)
            o_ref[...] = (x1 + f2).astype(o_ref.dtype)                  # residual 2
        else:
            o_ref[...] = x1.astype(o_ref.dtype)


# --------------------------------------------------------------------------------------
# Pass 3 (split path): FFN with fc1/fc2 weight slabs streamed over a d_ff grid axis
# --------------------------------------------------------------------------------------
def _ffn_kernel(x1_ref, ln2_ref, w1_ref, w2_ref, o_ref, h2_ref, acc_ref, *,
                compute_dtype, gelu_approx):
    ff = pl.program_id(2)

    @pl.when(ff == 0)
    def _init():
        h2_ref[...] = _rmsnorm(x1_ref[...], ln2_ref[...]).astype(h2_ref.dtype)
        acc_ref[...] = jnp.zeros_like(acc_ref)

    f1 = jnp.dot(h2_ref[...], w1_ref[...], preferred_element_type=jnp.float32)  # (tq, tff)
    g = jax.nn.gelu(f1, approximate=gelu_approx).astype(compute_dtype)
    acc_ref[...] += jnp.dot(g, w2_ref[...], preferred_element_type=jnp.float32)

    @pl.when(ff == pl.num_programs(2) - 1)
    def _fin():
        o_ref[...] = (x1_ref[...].astype(jnp.float32) + acc_ref[...]).astype(o_ref.dtype)


# --------------------------------------------------------------------------------------
# Wrapper
# --------------------------------------------------------------------------------------
def block_forward(x, params, *, n_heads, compute_dtype=jnp.float32,
                  tq=None, tkv=None, tff=None, fuse_ffn=None, gelu_approx=False):
    B, N, D = x.shape
    assert D % n_heads == 0
    d_head = D // n_heads
    d_ff = params['fc1_w'].shape[1]

    cap = _vmem_capacity_bytes()

    # Tile defaults. NOTE (v7x): keep B*(N/tq) >= 2 (ideally even) so both TensorCores
    # get work on the "parallel" axes.
    # TODO(synk): bump to 512 on v6e (128 MiB VMEM) via per-chip detection.
    if tq is None:
        tq = min(N, 256)
    if tkv is None:
        tkv = min(N, 256)
    if tff is None:
        tff = min(d_ff, 512)
    assert N % tq == 0 and N % tkv == 0 and d_ff % tff == 0

    cdt = jnp.dtype(compute_dtype)
    isz = cdt.itemsize
    f32 = jnp.float32

    # Weights streamed in the compute dtype (bf16 halves VMEM residency & DMA and is
    # MXU-native on every generation); norm weights stay f32.
    wqkv = params['qkv_w'].astype(cdt)
    wo = params['out_w'].astype(cdt)
    w1 = params['fc1_w'].astype(cdt)
    w2 = params['fc2_w'].astype(cdt)
    ln1 = params['ln1_w'].astype(f32)
    ln2 = params['ln2_w'].astype(f32)

    if fuse_ffn is None:
        # fuse only when (double-buffered) resident weights + the (tq, d_ff) f32 GELU
        # intermediate fit comfortably; otherwise stream the FFN (pass 3).
        fused_need = 2 * (wo.size + w1.size + w2.size) * isz + tq * d_ff * 4
        fuse_ffn = fused_need <= int(0.35 * cap)

    # ---------------- pass 1: RMSNorm1 + QKV projection ----------------
    qkv_kernel = functools.partial(_qkv_kernel, d_head=d_head, compute_dtype=cdt)
    need1 = (2 * (wqkv.size * isz + ln1.size * 4)
             + 2 * (tq * D * x.dtype.itemsize + 3 * tq * D * isz) + (4 << 20))
    q, k, v = pl.pallas_call(
        qkv_kernel,
        out_shape=(jax.ShapeDtypeStruct((B, N, D), cdt),
                   jax.ShapeDtypeStruct((B, N, D), cdt),
                   jax.ShapeDtypeStruct((B, N, D), cdt)),
        grid_spec=pltpu.PrefetchScalarGridSpec(
            num_scalar_prefetch=0,
            grid=(B, N // tq),
            in_specs=[
                pl.BlockSpec((None, tq, D), lambda b, i: (b, i, 0)),   # x tile
                pl.BlockSpec((1, D), lambda b, i: (0, 0)),             # ln1 weight
                pl.BlockSpec((D, 3 * D), lambda b, i: (0, 0)),         # qkv weight (resident)
            ],
            out_specs=(
                pl.BlockSpec((None, tq, D), lambda b, i: (b, i, 0)),   # q (pre-scaled)
                pl.BlockSpec((None, tq, D), lambda b, i: (b, i, 0)),   # k
                pl.BlockSpec((None, tq, D), lambda b, i: (b, i, 0)),   # v
            ),
        ),
        compiler_params=pltpu.CompilerParams(
            dimension_semantics=("parallel", "parallel"),
            vmem_limit_bytes=_vmem_limit(need1, cap)),
    )(x, ln1, wqkv)

    # ---------------- pass 2: flash attention + out-proj (+ optional fused FFN) --------
    attn_kernel = functools.partial(
        _attn_kernel, n_heads=n_heads, d_head=d_head, compute_dtype=cdt,
        fuse_ffn=fuse_ffn, approx_recip=(cdt == jnp.dtype(jnp.bfloat16)),
        gelu_approx=gelu_approx)

    in_specs = [
        pl.BlockSpec((None, tq, D), lambda b, i, j: (b, i, 0)),    # x (residual)
        pl.BlockSpec((None, tq, D), lambda b, i, j: (b, i, 0)),    # q tile
        pl.BlockSpec((None, tkv, D), lambda b, i, j: (b, j, 0)),   # k tile
        pl.BlockSpec((None, tkv, D), lambda b, i, j: (b, j, 0)),   # v tile
        pl.BlockSpec((D, D), lambda b, i, j: (0, 0)),              # attn out weight
    ]
    args = [x, q, k, v, wo]
    w_bytes2 = wo.size * isz
    if fuse_ffn:
        in_specs += [
            pl.BlockSpec((1, D), lambda b, i, j: (0, 0)),          # ln2 weight
            pl.BlockSpec((D, d_ff), lambda b, i, j: (0, 0)),       # fc1 weight (resident)
            pl.BlockSpec((d_ff, D), lambda b, i, j: (0, 0)),       # fc2 weight (resident)
        ]
        args += [ln2, w1, w2]
        w_bytes2 += ln2.size * 4 + (w1.size + w2.size) * isz

    need2 = (2 * w_bytes2
             + 2 * (tq * D * x.dtype.itemsize + tq * D * isz + 2 * tkv * D * isz + tq * D * 4)
             + (2 * n_heads * tq * _LANES + tq * D) * 4
             + (tq * d_ff * 4 if fuse_ffn else 0)
             + (4 << 20))

    x1 = pl.pallas_call(
        attn_kernel,
        out_shape=jax.ShapeDtypeStruct((B, N, D), x.dtype if fuse_ffn else jnp.float32),
        grid_spec=pltpu.PrefetchScalarGridSpec(
            num_scalar_prefetch=0,
            grid=(B, N // tq, N // tkv),                           # kv (reduction) axis last
            in_specs=in_specs,
            out_specs=pl.BlockSpec((None, tq, D), lambda b, i, j: (b, i, 0)),
            scratch_shapes=[
                pltpu.VMEM((n_heads, tq, _LANES), jnp.float32),    # running max (lane-replicated)
                pltpu.VMEM((n_heads, tq, _LANES), jnp.float32),    # running denom (lane-replicated)
                pltpu.VMEM((tq, D), jnp.float32),                  # context accumulator
            ],
        ),
        compiler_params=pltpu.CompilerParams(
            dimension_semantics=("parallel", "parallel", "arbitrary"),
            vmem_limit_bytes=_vmem_limit(need2, cap)),
    )(*args)

    if fuse_ffn:
        return x1

    # ---------------- pass 3: streamed FFN + residual (v7x-friendly) ----------------
    ffn_kernel = functools.partial(_ffn_kernel, compute_dtype=cdt, gelu_approx=gelu_approx)
    need3 = (2 * (ln2.size * 4 + 2 * D * tff * isz)
             + 2 * (2 * tq * D * 4)
             + (tq * D * isz + tq * D * 4)
             + (4 << 20))
    out = pl.pallas_call(
        ffn_kernel,
        out_shape=jax.ShapeDtypeStruct((B, N, D), x.dtype),
        grid_spec=pltpu.PrefetchScalarGridSpec(
            num_scalar_prefetch=0,
            grid=(B, N // tq, d_ff // tff),                        # d_ff (reduction) axis last
            in_specs=[
                pl.BlockSpec((None, tq, D), lambda b, i, f: (b, i, 0)),   # x1 (residual)
                pl.BlockSpec((1, D), lambda b, i, f: (0, 0)),             # ln2 weight
                pl.BlockSpec((D, tff), lambda b, i, f: (0, f)),           # fc1 slab (streamed)
                pl.BlockSpec((tff, D), lambda b, i, f: (f, 0)),           # fc2 slab (streamed)
            ],
            out_specs=pl.BlockSpec((None, tq, D), lambda b, i, f: (b, i, 0)),
            scratch_shapes=[
                pltpu.VMEM((tq, D), cdt),            # cached RMSNorm2(x1)
                pltpu.VMEM((tq, D), jnp.float32),    # FFN accumulator
            ],
        ),
        compiler_params=pltpu.CompilerParams(
            dimension_semantics=("parallel", "parallel", "arbitrary"),
            vmem_limit_bytes=_vmem_limit(need3, cap)),
    )(x1, ln2, w1, w2)
    return out


# --------------------------------------------------------------------------------------
# Pure-JAX reference mirroring the PyTorch module
# --------------------------------------------------------------------------------------
def reference_forward(x, params, *, n_heads):
    B, N, D = x.shape
    d_head = D // n_heads

    def rmsnorm(x, w, eps=1e-6):
        xf = x.astype(jnp.float32)
        rms = jnp.sqrt(jnp.mean(xf * xf, axis=-1, keepdims=True) + eps)
        return x / rms * w[0]

    h = rmsnorm(x, params['ln1_w'])
    qkv = h @ params['qkv_w']
    q, k, v = jnp.split(qkv, 3, axis=-1)
    q = q.reshape(B, N, n_heads, d_head).transpose(0, 2, 1, 3)
    k = k.reshape(B, N, n_heads, d_head).transpose(0, 2, 1, 3)
    v = v.reshape(B, N, n_heads, d_head).transpose(0, 2, 1, 3)
    attn = jnp.einsum('bhnd,bhmd->bhnm', q, k) / math.sqrt(d_head)
    attn = jax.nn.softmax(attn.astype(jnp.float32), axis=-1)
    ctx = jnp.einsum('bhnm,bhmd->bhnd', attn, v)
    ctx = ctx.transpose(0, 2, 1, 3).reshape(B, N, D)
    x1 = x + ctx @ params['out_w']
    h2 = rmsnorm(x1, params['ln2_w'])
    f = jax.nn.gelu(h2 @ params['fc1_w'], approximate=False) @ params['fc2_w']
    return x1 + f


if __name__ == "__main__":
    # Small config consistent with the module (d_model divisible by n_heads); tiles
    # chosen so the flash KV loop and the streamed-FFN d_ff loop both take 2 steps.
    B, N, D, H = 2, 32, 64, 4
    D_FF = 4 * D

    key = jax.random.PRNGKey(0)
    ks = jax.random.split(key, 6)
    std = 0.02
    params = {
        'ln1_w': jnp.ones((1, D), jnp.float32),
        'ln2_w': jnp.ones((1, D), jnp.float32),
        # stored as (in, out) == transpose of PyTorch Linear.weight
        'qkv_w': (std * jax.random.normal(ks[0], (D, 3 * D))).astype(jnp.float32),
        'out_w': (std * jax.random.normal(ks[1], (D, D))).astype(jnp.float32),
        'fc1_w': (std * jax.random.normal(ks[2], (D, D_FF))).astype(jnp.float32),
        'fc2_w': (std * jax.random.normal(ks[3], (D_FF, D))).astype(jnp.float32),
    }
    x = jax.random.normal(ks[4], (B, N, D), jnp.float32)

    ref = reference_forward(x, params, n_heads=H)

    # f32 / fused-FFN path: faithful to the PyTorch module (tight tolerance).
    out_fused = jax.block_until_ready(
        block_forward(x, params, n_heads=H, compute_dtype=jnp.float32,
                      tq=16, tkv=16, fuse_ffn=True))
    assert out_fused.shape == (B, N, D)
    assert jnp.allclose(out_fused, ref, atol=1e-4, rtol=1e-4), "fused f32 kernel mismatch"

    # f32 / streamed-FFN path (v7x-friendly: fc1/fc2 slabs pipelined over d_ff).
    out_split = jax.block_until_ready(
        block_forward(x, params, n_heads=H, compute_dtype=jnp.float32,
                      tq=16, tkv=16, tff=128, fuse_ffn=False))
    assert jnp.allclose(out_split, ref, atol=1e-4, rtol=1e-4), "split f32 kernel mismatch"

    # bf16 matmul path (MXU-native operands, bf16 exp, f32 accumulation): looser tolerance.
    out_bf16 = jax.block_until_ready(
        block_forward(x, params, n_heads=H, compute_dtype=jnp.bfloat16,
                      tq=16, tkv=16, fuse_ffn=True))
    assert jnp.allclose(out_bf16.astype(jnp.float32), ref, atol=3e-2, rtol=3e-2), \
        "bf16 kernel mismatch"

    print("KERNEL_OK")
</pallas_src>

<mosaic_0001>
module attributes {stable_mosaic.version = 11 : i64} {
  func.func @_qkv_kernel(%arg0: i32, %arg1: i32, %arg2: memref<1x16x64xf32, #tpu.memory_space<vmem>>, %arg3: memref<1x64xf32, #tpu.memory_space<vmem>>, %arg4: memref<64x192xf32, #tpu.memory_space<vmem>>, %arg5: memref<1x16x64xf32, #tpu.memory_space<vmem>>, %arg6: memref<1x16x64xf32, #tpu.memory_space<vmem>>, %arg7: memref<1x16x64xf32, #tpu.memory_space<vmem>>) attributes {dimension_semantics = [#tpu.dimension_semantics<parallel>, #tpu.dimension_semantics<parallel>], iteration_bounds = array<i64: 2, 2>, scalar_prefetch = 0 : i64, scratch_operands = 0 : i64, tpu.core_type = #tpu.core_type<tc>, window_params = [{transform_indices = @transform_0, window_bounds = array<i64: 1, 16, 64>}, {pipeline_mode = #tpu.pipeline_mode<synchronous>, transform_indices = @transform_1, window_bounds = array<i64: 1, 64>}, {pipeline_mode = #tpu.pipeline_mode<synchronous>, transform_indices = @transform_2, window_bounds = array<i64: 64, 192>}, {transform_indices = @transform_3, window_bounds = array<i64: 1, 16, 64>}, {transform_indices = @transform_4, window_bounds = array<i64: 1, 16, 64>}, {transform_indices = @transform_5, window_bounds = array<i64: 1, 16, 64>}]} {
    %c0 = arith.constant 0 : index
    %c0_0 = arith.constant 0 : index
    %c0_1 = arith.constant 0 : index
    %0 = vector.load %arg2[%c0, %c0_0, %c0_1] : memref<1x16x64xf32, #tpu.memory_space<vmem>>, vector<1x16x64xf32>
    %1 = vector.shape_cast %0 : vector<1x16x64xf32> to vector<16x64xf32>
    %c0_2 = arith.constant 0 : index
    %c0_3 = arith.constant 0 : index
    %2 = vector.load %arg3[%c0_2, %c0_3] : memref<1x64xf32, #tpu.memory_space<vmem>>, vector<1x64xf32>
    %3 = arith.mulf %1, %1 : vector<16x64xf32>
    %cst = arith.constant dense<0.000000e+00> : vector<16xf32>
    %4 = vector.multi_reduction <add>, %3, %cst [1] : vector<16x64xf32> to vector<16xf32>
    %5 = vector.shape_cast %4 : vector<16xf32> to vector<16x1xf32>
    %cst_4 = arith.constant 6.400000e+01 : f32
    %6 = vector.broadcast %cst_4 : f32 to vector<16x1xf32>
    %7 = arith.divf %5, %6 : vector<16x1xf32>
    %cst_5 = arith.constant 9.99999997E-7 : f32
    %8 = vector.broadcast %cst_5 : f32 to vector<16x1xf32>
    %9 = arith.addf %7, %8 : vector<16x1xf32>
    %10 = math.rsqrt %9 : vector<16x1xf32>
    %11 = vector.broadcast %10 : vector<16x1xf32> to vector<16x64xf32>
    %12 = arith.mulf %1, %11 : vector<16x64xf32>
    %13 = vector.broadcast %2 : vector<1x64xf32> to vector<16x64xf32>
    %14 = arith.mulf %12, %13 : vector<16x64xf32>
    %c0_6 = arith.constant 0 : index
    %c0_7 = arith.constant 0 : index
    %15 = vector.load %arg4[%c0_6, %c0_7] : memref<64x192xf32, #tpu.memory_space<vmem>>, vector<64x192xf32>
    %cst_8 = arith.constant dense<0.000000e+00> : vector<16x192xf32>
    %16 = tpu.matmul %14, %15, %cst_8 {dimension_numbers = #tpu.dot_dimension_numbers<[1], [0], [0], [1], [0, 0, 1, 1], [], []>} : vector<16x64xf32>, vector<64x192xf32>, vector<16x192xf32> -> vector<16x192xf32>
    %17 = vector.extract_strided_slice %16 {offsets = [0, 0], sizes = [16, 64], strides = [1, 1]} : vector<16x192xf32> to vector<16x64xf32>
    %cst_9 = arith.constant 2.500000e-01 : f32
    %18 = vector.broadcast %cst_9 : f32 to vector<16x64xf32>
    %19 = arith.mulf %17, %18 : vector<16x64xf32>
    %c0_10 = arith.constant 0 : index
    %c0_11 = arith.constant 0 : index
    %c0_12 = arith.constant 0 : index
    %20 = vector.load %arg5[%c0_10, %c0_11, %c0_12] : memref<1x16x64xf32, #tpu.memory_space<vmem>>, vector<1x16x64xf32>
    %21 = vector.shape_cast %20 : vector<1x16x64xf32> to vector<16x64xf32>
    %22 = vector.shape_cast %19 : vector<16x64xf32> to vector<1x16x64xf32>
    tpu.vector_store %arg5[%c0_10, %c0_11, %c0_12], %22 {strides = array<i32>} : memref<1x16x64xf32, #tpu.memory_space<vmem>>, vector<1x16x64xf32>,
    %23 = vector.extract_strided_slice %16 {offsets = [0, 64], sizes = [16, 64], strides = [1, 1]} : vector<16x192xf32> to vector<16x64xf32>
    %c0_13 = arith.constant 0 : index
    %c0_14 = arith.constant 0 : index
    %c0_15 = arith.constant 0 : index
    %24 = vector.load %arg6[%c0_13, %c0_14, %c0_15] : memref<1x16x64xf32, #tpu.memory_space<vmem>>, vector<1x16x64xf32>
    %25 = vector.shape_cast %24 : vector<1x16x64xf32> to vector<16x64xf32>
    %26 = vector.shape_cast %23 : vector<16x64xf32> to vector<1x16x64xf32>
    tpu.vector_store %arg6[%c0_13, %c0_14, %c0_15], %26 {strides = array<i32>} : memref<1x16x64xf32, #tpu.memory_space<vmem>>, vector<1x16x64xf32>,
    %27 = vector.extract_strided_slice %16 {offsets = [0, 128], sizes = [16, 64], strides = [1, 1]} : vector<16x192xf32> to vector<16x64xf32>
    %c0_16 = arith.constant 0 : index
    %c0_17 = arith.constant 0 : index
    %c0_18 = arith.constant 0 : index
    %28 = vector.load %arg7[%c0_16, %c0_17, %c0_18] : memref<1x16x64xf32, #tpu.memory_space<vmem>>, vector<1x16x64xf32>
    %29 = vector.shape_cast %28 : vector<1x16x64xf32> to vector<16x64xf32>
    %30 = vector.shape_cast %27 : vector<16x64xf32> to vector<1x16x64xf32>
    tpu.vector_store %arg7[%c0_16, %c0_17, %c0_18], %30 {strides = array<i32>} : memref<1x16x64xf32, #tpu.memory_space<vmem>>, vector<1x16x64xf32>,
    return
  }
  func.func @transform_0(%arg0: i32, %arg1: i32) -> (i32, i32, i32) {
    %c0_i32 = arith.constant 0 : i32
    %c0_i32_0 = arith.constant 0 : i32
    return %arg0, %arg1, %c0_i32 : i32, i32, i32
  }
  func.func @transform_1(%arg0: i32, %arg1: i32) -> (i32, i32) {
    %c0_i32 = arith.constant 0 : i32
    %c0_i32_0 = arith.constant 0 : i32
    %c0_i32_1 = arith.constant 0 : i32
    return %c0_i32, %c0_i32_0 : i32, i32
  }
  func.func @transform_2(%arg0: i32, %arg1: i32) -> (i32, i32) {
    %c0_i32 = arith.constant 0 : i32
    %c0_i32_0 = arith.constant 0 : i32
    %c0_i32_1 = arith.constant 0 : i32
    return %c0_i32, %c0_i32_0 : i32, i32
  }
  func.func @transform_3(%arg0: i32, %arg1: i32) -> (i32, i32, i32) {
    %c0_i32 = arith.constant 0 : i32
    %c0_i32_0 = arith.constant 0 : i32
    return %arg0, %arg1, %c0_i32 : i32, i32, i32
  }
  func.func @transform_4(%arg0: i32, %arg1: i32) -> (i32, i32, i32) {
    %c0_i32 = arith.constant 0 : i32
    %c0_i32_0 = arith.constant 0 : i32
    return %arg0, %arg1, %c0_i32 : i32, i32, i32
  }
  func.func @transform_5(%arg0: i32, %arg1: i32) -> (i32, i32, i32) {
    %c0_i32 = arith.constant 0 : i32
    %c0_i32_0 = arith.constant 0 : i32
    return %arg0, %arg1, %c0_i32 : i32, i32, i32
  }
}

</mosaic_0001>

<llo_original>
// kernel: tpu_custom_call.1
$region0: #{tpu_custom_call.1}
  #allocation0 [shape = 'u32[]', space=smem, size = 0x4, offset = 0x4, fixed_abs, tag = 'smem constant byte address 0x4 - core index']
  #allocation1 [shape = 'u32[72,128]{1,0:T(1,128)}', space=vmem, size = 0x9000, scoped, tag = 'internal scratch']
  %s0 = inlined_call_operand.hbm [shape: f32[2,32,64], index: 0, kind: input, shape index: {}]
  %s1 = inlined_call_operand.hbm [shape: f32[1,64], index: 1, kind: input, shape index: {}]
  %s2 = inlined_call_operand.hbm [shape: f32[64,192], index: 2, kind: input, shape index: {}]
  %s3 = inlined_call_operand.hbm [shape: f32[2,32,64], index: 3, kind: output, shape index: {0}]
  %s4 = inlined_call_operand.hbm [shape: f32[2,32,64], index: 4, kind: output, shape index: {1}]
  %s5 = inlined_call_operand.hbm [shape: f32[2,32,64], index: 5, kind: output, shape index: {2}]
  %6 = xla_tuple %s3, %s4, %s5
  %s7 = sld [smem:[#allocation0]]
  $region73: #{tpu_custom_call.1} parent=0
    _
  %s9 = ssub.s32 1, %s7
  %s10 = scalar_select 0, %s9, %s7
  $region1: #{tpu_custom_call.1} parent=0
    #allocation2 [shape = 'u8[16384]{0}', space=vmem, size = 0x4000, scoped, tag = 'input window, operand 0']
    #allocation3 [shape = 's32[2]{0}', space=sflag, size = 0x8, scoped, tag = 'scoped memory for tpu_custom_call.1']
    #allocation4 [shape = 's32[2]{0}', space=sflag, size = 0x8, scoped, tag = 'scoped memory for tpu_custom_call.1']
    #allocation5 [shape = 'u8[512]{0}', space=vmem, size = 0x400, scoped, tag = 'input window, operand 1, single buffered']
    #allocation6 [shape = 's32[1]{0}', space=sflag, size = 0x4, scoped, tag = 'scoped memory for tpu_custom_call.1']
    #allocation7 [shape = 'u8[65536]{0}', space=vmem, size = 0x10000, scoped, tag = 'input window, operand 2, single buffered']
    #allocation8 [shape = 'u8[16384]{0}', space=vmem, size = 0x4000, scoped, tag = 'output window, operand 0']
    #allocation9 [shape = 'u8[16384]{0}', space=vmem, size = 0x4000, scoped, tag = 'output window, operand 1']
    #allocation10 [shape = 's32[2]{0}', space=sflag, size = 0x8, scoped, tag = 'scoped memory for tpu_custom_call.1']
    #allocation11 [shape = 'u8[16384]{0}', space=vmem, size = 0x4000, scoped, tag = 'output window, operand 2']
    %11 = vsyncpa [#allocation3], 0
    %s12 = scalar_lea.sflag [#allocation3], 1
    %13 = vsyncpa %s12, 0
    %14 = vsyncpa [#allocation6], 0
    %15 = vsyncpa [#allocation4], 0
    %s16 = scalar_lea.sflag [#allocation4], 1
    %17 = vsyncpa %s16, 0
    %18 = vsyncpa [#allocation10], 0
    %s19 = scalar_lea.sflag [#allocation10], 1
    %20 = vsyncpa %s19, 0
    loop: start=0, step=1, limit=6
    $region2: #{tpu_custom_call.1} parent=1 // loop_pre_header
      _
    $region3: #{tpu_custom_call.1} parent=1 // loop_header
      %s22 = sphi 0, %s26
      %p23 = scmp.ge.s32.totalorder %s22, 6
      %s29 = sphi 0, %s41
      %s30 = sphi 0, %s37
      %s31 = sphi 0, %s29
      %s32 = sphi 0, %s30
      %s33 = sphi 0, %s31
      %s34 = sphi 0, %s32
      %s46 = sphi 0, %s48
      %s49 = sphi 0, %s46
      %s50 = sphi 0, %s49
      %s66 = sphi 0, %s50
      %s70 = sphi 0, %s70
      %s72 = sphi 0, %s70
      %s73 = sphi 0, %s72
      %s87 = sphi 0, %s73
      %s91 = sphi 0, %s91
      %s93 = sphi 0, %s91
      %s94 = sphi 0, %s93
      %s108 = sphi 0, %s94
      %s116 = sphi 0, %s118
      %s119 = sphi 0, %s116
      %s120 = sphi 0, %s119
      %s136 = sphi 0, %s120
      %s144 = sphi 0, %s146
      %s147 = sphi 0, %s144
      %s148 = sphi 0, %s147
      %s164 = sphi 0, %s148
      %s172 = sphi 0, %s174
      %s175 = sphi 0, %s172
      %s176 = sphi 0, %s175
      %s192 = sphi 0, %s176
    $region4: #{tpu_custom_call.1} parent=1 // loop_header_branch
      %25 = sbr.rel (%p23) target = $region8
    $region5: #{tpu_custom_call.1} parent=1 // loop_body
      %s27 = ssub.s32 %s22, 1
      %s28 = ssub.s32 %s22, 2
      %s35 = sadd.s32 1, %s30
      %p36 = scmp.ge.s32.totalorder %s35, 2
      %s37 = scalar_select %p36, 0, %s35
      %s38 = sadd.s32 1, %s29
      %s39 = scalar_select %p36, %s38, %s29
      %p40 = scmp.ge.s32.totalorder %s39, 2
      %s41 = scalar_select %p40, 0, %s39
      %s42 = ssub.s32 %s29, %s41
      %s43 = ssub.s32 %s30, %s37
      %s44 = sor.u32 %s42, %s43
      %p45 = scmp.eq.s32.totalorder %s44, 0
      %s47 = sadd.s32 %s46, 1
      %s48 = scalar_select %p45, %s46, %s47
      %p51 = pneg %p45
      %p52 = scmp.eq.s32.totalorder %s22, 3
      %p53 = por %p51, %p52
      %p54 = scmp.ne.s32.totalorder %s46, %s49
      %p55 = scmp.eq.s32.totalorder %s22, 0
      %p56 = por %p54, %p55
      %p57 = scmp.ne.s32.totalorder %s46, %s49
      %p58 = scmp.eq.s32.totalorder %s27, 3
      %p59 = por %p57, %p58
      %p60 = scmp.ne.s32.totalorder %s49, %s50
      %p61 = scmp.eq.s32.totalorder %s27, 0
      %p62 = por %p60, %p61
      %p63 = scmp.ne.s32.totalorder %s49, %s50
      %p64 = scmp.eq.s32.totalorder %s28, 3
      %p65 = por %p63, %p64
      %p67 = scmp.ne.s32.totalorder %s50, %s66
      %p68 = scmp.eq.s32.totalorder %s28, 0
      %p69 = por %p67, %p68
      %s71 = sadd.s32 %s70, 1
      %p74 = scmp.eq.s32.totalorder %s22, 3
      %p75 = scmp.ne.s32.totalorder %s70, %s72
      %p76 = scmp.eq.s32.totalorder %s22, 0
      %p77 = por %p75, %p76
      %p78 = scmp.ne.s32.totalorder %s70, %s72
      %p79 = scmp.eq.s32.totalorder %s27, 3
      %p80 = por %p78, %p79
      %p81 = scmp.ne.s32.totalorder %s72, %s73
      %p82 = scmp.eq.s32.totalorder %s27, 0
      %p83 = por %p81, %p82
      %p84 = scmp.ne.s32.totalorder %s72, %s73
      %p85 = scmp.eq.s32.totalorder %s28, 3
      %p86 = por %p84, %p85
      %p88 = scmp.ne.s32.totalorder %s73, %s87
      %p89 = scmp.eq.s32.totalorder %s28, 0
      %p90 = por %p88, %p89
      %s92 = sadd.s32 %s91, 1
      %p95 = scmp.eq.s32.totalorder %s22, 3
      %p96 = scmp.ne.s32.totalorder %s91, %s93
      %p97 = scmp.eq.s32.totalorder %s22, 0
      %p98 = por %p96, %p97
      %p99 = scmp.ne.s32.totalorder %s91, %s93
      %p100 = scmp.eq.s32.totalorder %s27, 3
      %p101 = por %p99, %p100
      %p102 = scmp.ne.s32.totalorder %s93, %s94
      %p103 = scmp.eq.s32.totalorder %s27, 0
      %p104 = por %p102, %p103
      %p105 = scmp.ne.s32.totalorder %s93, %s94
      %p106 = scmp.eq.s32.totalorder %s28, 3
      %p107 = por %p105, %p106
      %p109 = scmp.ne.s32.totalorder %s94, %s108
      %p110 = scmp.eq.s32.totalorder %s28, 0
      %p111 = por %p109, %p110
      %s112 = ssub.s32 %s29, %s41
      %s113 = ssub.s32 %s30, %s37
      %s114 = sor.u32 %s112, %s113
      %p115 = scmp.eq.s32.totalorder %s114, 0
      %s117 = sadd.s32 %s116, 1
      %s118 = scalar_select %p115, %s116, %s117
      %p121 = pneg %p115
      %p122 = scmp.eq.s32.totalorder %s22, 3
      %p123 = por %p121, %p122
      %p124 = scmp.ne.s32.totalorder %s116, %s119
      %p125 = scmp.eq.s32.totalorder %s22, 0
      %p126 = por %p124, %p125
      %p127 = scmp.ne.s32.totalorder %s116, %s119
      %p128 = scmp.eq.s32.totalorder %s27, 3
      %p129 = por %p127, %p128
      %p130 = scmp.ne.s32.totalorder %s119, %s120
      %p131 = scmp.eq.s32.totalorder %s27, 0
      %p132 = por %p130, %p131
      %p133 = scmp.ne.s32.totalorder %s119, %s120
      %p134 = scmp.eq.s32.totalorder %s28, 3
      %p135 = por %p133, %p134
      %p137 = scmp.ne.s32.totalorder %s120, %s136
      %p138 = scmp.eq.s32.totalorder %s28, 0
      %p139 = por %p137, %p138
      %s140 = ssub.s32 %s29, %s41
      %s141 = ssub.s32 %s30, %s37
      %s142 = sor.u32 %s140, %s141
      %p143 = scmp.eq.s32.totalorder %s142, 0
      %s145 = sadd.s32 %s144, 1
      %s146 = scalar_select %p143, %s144, %s145
      %p149 = pneg %p143
      %p150 = scmp.eq.s32.totalorder %s22, 3
      %p151 = por %p149, %p150
      %p152 = scmp.ne.s32.totalorder %s144, %s147
      %p153 = scmp.eq.s32.totalorder %s22, 0
      %p154 = por %p152, %p153
      %p155 = scmp.ne.s32.totalorder %s144, %s147
      %p156 = scmp.eq.s32.totalorder %s27, 3
      %p157 = por %p155, %p156
      %p158 = scmp.ne.s32.totalorder %s147, %s148
      %p159 = scmp.eq.s32.totalorder %s27, 0
      %p160 = por %p158, %p159
      %p161 = scmp.ne.s32.totalorder %s147, %s148
      %p162 = scmp.eq.s32.totalorder %s28, 3
      %p163 = por %p161, %p162
      %p165 = scmp.ne.s32.totalorder %s148, %s164
      %p166 = scmp.eq.s32.totalorder %s28, 0
      %p167 = por %p165, %p166
      %s168 = ssub.s32 %s29, %s41
      %s169 = ssub.s32 %s30, %s37
      %s170 = sor.u32 %s168, %s169
      %p171 = scmp.eq.s32.totalorder %s170, 0
      %s173 = sadd.s32 %s172, 1
      %s174 = scalar_select %p171, %s172, %s173
      %p177 = pneg %p171
      %p178 = scmp.eq.s32.totalorder %s22, 3
      %p179 = por %p177, %p178
      %p180 = scmp.ne.s32.totalorder %s172, %s175
      %p181 = scmp.eq.s32.totalorder %s22, 0
      %p182 = por %p180, %p181
      %p183 = scmp.ne.s32.totalorder %s172, %s175
      %p184 = scmp.eq.s32.totalorder %s27, 3
      %p185 = por %p183, %p184
      %p186 = scmp.ne.s32.totalorder %s175, %s176
      %p187 = scmp.eq.s32.totalorder %s27, 0
      %p188 = por %p186, %p187
      %p189 = scmp.ne.s32.totalorder %s175, %s176
      %p190 = scmp.eq.s32.totalorder %s28, 3
      %p191 = por %p189, %p190
      %p193 = scmp.ne.s32.totalorder %s176, %s192
      %p194 = scmp.eq.s32.totalorder %s28, 0
      %p195 = por %p193, %p194
      %p196 = scmp.le.s32.totalorder 1, %s22
      %p197 = scmp.lt.s32.totalorder %s22, 5
      %p198 = pnand %p196, %p197
      %p199 = pneg %p198
      // Predicated region
      $region9: #{tpu_custom_call.1} parent=5 // pred_check
        _
      $region10: #{tpu_custom_call.1} parent=5 // pred_check_branch
        %201 = sbr.rel (%p198) target = $region12
      $region11: #{tpu_custom_call.1} parent=5 // pred_region
        %s202 = ssub.s32 %s22, 1
        // Predicated region
        $region13: #{tpu_custom_call.1} parent=11 // pred_check
          %p203 = pneg %p83
        $region14: #{tpu_custom_call.1} parent=11 // pred_check_branch
          %205 = sbr.rel (%p203) target = $region16
        $region15: #{tpu_custom_call.1} parent=11 // pred_region
          %207 = vsyncadd [#allocation6], 0
          %s209 = sshll.u32 %s1, 4
          %s210 = int_to_ptr.hbm [resolvable:$true] %s209
          %s211 = sshll.u32 [#allocation5], 4
          %s212 = int_to_ptr.vmem [resolvable:$true] %s211
          %214 = dma.hbm_to_vmem [thread:$0]  %s210, 16, %s212, [#allocation6]
        $region16: #{tpu_custom_call.1} parent=11 // pred_fallthru
          _
        // Predicated region
        $region17: #{tpu_custom_call.1} parent=11 // pred_check
          %p215 = pneg %p104
        $region18: #{tpu_custom_call.1} parent=11 // pred_check_branch
          %217 = sbr.rel (%p215) target = $region20
        $region19: #{tpu_custom_call.1} parent=11 // pred_region
          %219 = vsyncadd [#allocation6], 0
          %s220 = sshll.u32 %s2, 4
          %s221 = int_to_ptr.hbm [resolvable:$true] %s220
          %s222 = sshll.u32 [#allocation7], 4
          %s223 = int_to_ptr.vmem [resolvable:$true] %s222
          %228 = dma.hbm_to_vmem [thread:$0]  %s221, 2048, %s223, [#allocation6], 256, 256, 16
        $region20: #{tpu_custom_call.1} parent=11 // pred_fallthru
          _
      $region12: #{tpu_custom_call.1} parent=5 // pred_fallthru
        _
      %p229 = scmp.lt.s32.totalorder %s22, 4
      // Predicated region
      $region21: #{tpu_custom_call.1} parent=5 // pred_check
        %p230 = pneg %p229
      $region22: #{tpu_custom_call.1} parent=5 // pred_check_branch
        %232 = sbr.rel (%p230) target = $region24
      $region23: #{tpu_custom_call.1} parent=5 // pred_region
        // Predicated region
        $region25: #{tpu_custom_call.1} parent=23 // pred_check
          %p233 = pneg %p56
        $region26: #{tpu_custom_call.1} parent=23 // pred_check_branch
          %235 = sbr.rel (%p233) target = $region28
        $region27: #{tpu_custom_call.1} parent=23 // pred_region
          %s236 = sand.u32 %s46, 1
          %s237 = scalar_lea.sflag [#allocation3], %s236
          %s238 = sand.u32 %s46, 1
          %s239 = smul.addr %s238, 16
          %s240 = scalar_lea.vmem [#allocation2], %s239
          %s241 = smul.u32 2, %s30
          %243 = vsyncadd %s237, 0
          %s244 = smul.addr %s29, 4
          %s245 = sadd.s32 %s241, %s244
          %s246 = smul.addr %s245, 8
          %s247 = scalar_lea.hbm %s0, %s246
          %s248 = sshll.u32 %s247, 4
          %s249 = int_to_ptr.hbm [resolvable:$true] %s248
          %s250 = sshll.u32 %s240, 4
          %s251 = int_to_ptr.vmem [resolvable:$true] %s250
          %256 = dma.hbm_to_vmem [thread:$0]  %s249, 256, %s251, %s237, 128, 128, 8
        $region28: #{tpu_custom_call.1} parent=23 // pred_fallthru
          _
      $region24: #{tpu_custom_call.1} parent=5 // pred_fallthru
        _
      %p257 = scmp.le.s32.totalorder 1, %s22
      %p258 = scmp.lt.s32.totalorder %s22, 5
      %p259 = pnand %p257, %p258
      %p260 = pneg %p259
      // Predicated region
      $region29: #{tpu_custom_call.1} parent=5 // pred_check
        _
      $region30: #{tpu_custom_call.1} parent=5 // pred_check_branch
        %262 = sbr.rel (%p259) target = $region32
      $region31: #{tpu_custom_call.1} parent=5 // pred_region
        %s263 = ssub.s32 %s22, 1
        %s264 = sand.u32 %s49, 1
        %s265 = scalar_lea.sflag [#allocation3], %s264
        %s266 = sand.u32 %s49, 1
        %s267 = smul.addr %s266, 16
        %s268 = scalar_lea.vmem [#allocation2], %s267
        // Predicated region
        $region33: #{tpu_custom_call.1} parent=31 // pred_check
          %p269 = pneg %p62
        $region34: #{tpu_custom_call.1} parent=31 // pred_check_branch
          %271 = sbr.rel (%p269) target = $region36
        $region35: #{tpu_custom_call.1} parent=31 // pred_region
          %273 = dma.done %s265, 256
        $region36: #{tpu_custom_call.1} parent=31 // pred_fallthru
          _
        // Predicated region
        $region37: #{tpu_custom_call.1} parent=31 // pred_check
          %p274 = pneg %p83
        $region38: #{tpu_custom_call.1} parent=31 // pred_check_branch
          %276 = sbr.rel (%p274) target = $region40
        $region39: #{tpu_custom_call.1} parent=31 // pred_region
          %278 = dma.done [#allocation6], 16
        $region40: #{tpu_custom_call.1} parent=31 // pred_fallthru
          _
        // Predicated region
        $region41: #{tpu_custom_call.1} parent=31 // pred_check
          %p279 = pneg %p104
        $region42: #{tpu_custom_call.1} parent=31 // pred_check_branch
          %281 = sbr.rel (%p279) target = $region44
        $region43: #{tpu_custom_call.1} parent=31 // pred_region
          %283 = dma.done [#allocation6], 2048
        $region44: #{tpu_custom_call.1} parent=31 // pred_fallthru
          _
        %s284 = sand.u32 %s49, 1
        %s285 = scalar_lea.sflag [#allocation3], %s284
        %s286 = sand.u32 %s49, 1
        %s287 = smul.addr %s286, 16
        %s288 = scalar_lea.vmem [#allocation2], %s287
        %p289 = pneg %p62
        %p290 = pneg %p59
        %p291 = pneg %p83
        %p292 = pneg %p80
        %p293 = pneg %p104
        %p294 = pneg %p101
        %p295 = pneg %p132
        %p296 = pneg %p129
        %s297 = sand.u32 %s119, 1
        %s298 = scalar_lea.sflag [#allocation4], %s297
        %s299 = sand.u32 %s119, 1
        %s300 = smul.addr %s299, 16
        %s301 = scalar_lea.vmem [#allocation8], %s300
        %p302 = pneg %p160
        %p303 = pneg %p157
        %s304 = sand.u32 %s27, 1
        %s305 = scalar_lea.sflag [#allocation10], %s304
        %s306 = sand.u32 %s147, 1
        %s307 = smul.addr %s306, 16
        %s308 = scalar_lea.vmem [#allocation9], %s307
        %p309 = pneg %p188
        %p310 = pneg %p185
        %s311 = sand.u32 %s27, 1
        %s312 = scalar_lea.sflag [#allocation10], %s311
        %s313 = sand.u32 %s175, 1
        %s314 = smul.addr %s313, 16
        %s315 = scalar_lea.vmem [#allocation11], %s314
        %s316 = smul.u32 2, %s32
        %s317 = smul.u32 2, %s32
        %s318 = smul.u32 2, %s32
        %s319 = smul.u32 2, %s32
        %v320 = vld [vmem:[%s268] sm:$0xff]
        %v321 = vld [vmem:[%s268 + $0x8] sm:$0xff]
        %v322 = vld [vmem:[#allocation5] sm:$0x1]
        %v323 = vmul.f32 %v320, %v320
        %v324 = vmul.f32 %v321, %v321
        %vm325 = vcmask 523264
        %v326 = vsel %vm325, %v323, 0.0
        %327 = vadd.xlane.f32.xlu0 %v326
        %v328 = vpop.xlane.xlu0 %327
        %v329 = vsel %vm325, %v324, 0.0
        %330 = vadd.xlane.f32.xlu0 %v329
        %v331 = vpop.xlane.xlu0 %330
        %v332 = vrcp.pop 64.0
        %v333 = vmul.f32 64.0, %v332
        %v334 = vsub.f32 1.0, %v333
        %v335 = vmul.f32 %v332, %v334
        %v336 = vadd.f32 %v332, %v335
        %vm337 = vweird.f32 %v332
        %v338 = vsel %vm337, %v332, %v336
        %v339 = vmul.f32 %v328, %v338
        %v340 = vmul.f32 %v331, %v338
        %v341 = vadd.f32 %v339, 1e-06
        %v342 = vadd.f32 %v340, 1e-06
        %v343 = vrsqrt.pop %v341
        %v344 = vmul.f32 %v343, %v341
        %v345 = vmul.f32 %v344, %v343
        %v346 = vmul.f32 0.5, %v345
        %v347 = vsub.f32 1.5, %v346
        %v348 = vmul.f32 %v343, %v347
        %vm349 = vweird.f32 %v341
        %vm350 = vweird.f32 %v343
        %vm351 = vmor %vm349, %vm350
        %v352 = vsel %vm351, %v343, %v348
        %v353 = vrsqrt.pop %v342
        %v354 = vmul.f32 %v353, %v342
        %v355 = vmul.f32 %v354, %v353
        %v356 = vmul.f32 0.5, %v355
        %v357 = vsub.f32 1.5, %v356
        %v358 = vmul.f32 %v353, %v357
        %vm359 = vweird.f32 %v342
        %vm360 = vweird.f32 %v353
        %vm361 = vmor %vm359, %vm360
        %v362 = vsel %vm361, %v353, %v358
        %v363 = vmul.f32 %v320, %v352
        %v364 = vmul.f32 %v321, %v362
        %v366 = vperm.slane %v322, 0
        %v368 = vmul.f32 %v363, %v366
        %v369 = vmul.f32 %v364, %v366
        %v370 = vld [vmem:[#allocation7] sm:$0xff]
        %v371 = vld [vmem:[#allocation7 + $0x8] sm:$0xff]
        %v372 = vld [vmem:[#allocation7 + $0x10] sm:$0xff]
        %v373 = vld [vmem:[#allocation7 + $0x18] sm:$0xff]
        %v374 = vld [vmem:[#allocation7 + $0x20] sm:$0xff]
        %v375 = vld [vmem:[#allocation7 + $0x28] sm:$0xff]
        %v376 = vld [vmem:[#allocation7 + $0x30] sm:$0xff]
        %v377 = vld [vmem:[#allocation7 + $0x38] sm:$0xff]
        %v378 = vld [vmem:[#allocation7 + $0x40] sm:$0xff]
        %v379 = vld [vmem:[#allocation7 + $0x48] sm:$0xff]
        %v380 = vld [vmem:[#allocation7 + $0x50] sm:$0xff]
        %v381 = vld [vmem:[#allocation7 + $0x58] sm:$0xff]
        %v382 = vld [vmem:[#allocation7 + $0x60] sm:$0xff]
        %v383 = vld [vmem:[#allocation7 + $0x68] sm:$0xff]
        %v384 = vld [vmem:[#allocation7 + $0x70] sm:$0xff]
        %v385 = vld [vmem:[#allocation7 + $0x78] sm:$0xff]
        %v387 = vsel %vm325, %v368, 0
        %v390 = vsel %vm325, %v369, 0
        %392 = vmatpush.msra.mxu0 0.0
        %393 = vmatpush.msra.mxu0 0.0
        %394 = vmatpush.msra.mxu0 0.0
        %395 = vmatpush.msra.mxu0 0.0
        %396 = vmatpush.msra.mxu0 0.0
        %397 = vmatpush.msra.mxu0 0.0
        %398 = vmatpush.msra.mxu0 0.0
        %399 = vmatpush.msra.mxu0 0.0
        %400 = vmatpush.msra.mxu0 %v384
        %401 = vmatpush.msra.mxu0 %v382
        %402 = vmatpush.msra.mxu0 %v380
        %403 = vmatpush.msra.mxu0 %v378
        %404 = vmatpush.msra.mxu0 %v376
        %405 = vmatpush.msra.mxu0 %v374
        %406 = vmatpush.msra.mxu0 %v372
        %407 = vmatpush.msra.mxu0 %v370
        %408 = vmatmul.f32.gmra.mxu0 %v387
        %v409 = vpop.f32.mrf.mxu0
        %v410 = vadd.f32 0.0, %v409
        %411 = vmatmul.f32.gmra.mxu0 %v390
        %v412 = vpop.f32.mrf.mxu0
        %v413 = vadd.f32 0.0, %v412
        %414 = vdwg.mxu0
        %415 = vmatpush.msra.mxu0 0.0
        %416 = vmatpush.msra.mxu0 0.0
        %417 = vmatpush.msra.mxu0 0.0
        %418 = vmatpush.msra.mxu0 0.0
        %419 = vmatpush.msra.mxu0 0.0
        %420 = vmatpush.msra.mxu0 0.0
        %421 = vmatpush.msra.mxu0 0.0
        %422 = vmatpush.msra.mxu0 0.0
        %423 = vmatpush.msra.mxu0 %v385
        %424 = vmatpush.msra.mxu0 %v383
        %425 = vmatpush.msra.mxu0 %v381
        %426 = vmatpush.msra.mxu0 %v379
        %427 = vmatpush.msra.mxu0 %v377
        %428 = vmatpush.msra.mxu0 %v375
        %429 = vmatpush.msra.mxu0 %v373
        %430 = vmatpush.msra.mxu0 %v371
        %431 = vmatmul.f32.gmra.mxu0 %v387
        %v432 = vpop.f32.mrf.mxu0
        %v433 = vadd.f32 0.0, %v432
        %434 = vmatmul.f32.gmra.mxu0 %v390
        %v435 = vpop.f32.mrf.mxu0
        %v436 = vadd.f32 0.0, %v435
        %437 = vdwg.mxu0
        %v438 = vmul.f32 %v410, 0.25
        %v439 = vmul.f32 %v413, 0.25
        %440 = vst.msk [vmem:[%s301] sm:$0xff] %vm325, %v438
        %441 = vst.msk [vmem:[%s301 + $0x8] sm:$0xff] %vm325, %v439
        %444 = vrot.lane.b32.xlu0 %v410, 64
        %v445 = vpop.permute.xlu0 %444
        %446 = vrot.lane.b32.xlu0 %v413, 64
        %v447 = vpop.permute.xlu0 %446
        %450 = vst.msk [vmem:[%s308] sm:$0xff] %vm325, %v445
        %451 = vst.msk [vmem:[%s308 + $0x8] sm:$0xff] %vm325, %v447
        %452 = vst.msk [vmem:[%s315] sm:$0xff] %vm325, %v433
        %453 = vst.msk [vmem:[%s315 + $0x8] sm:$0xff] %vm325, %v436
        %s454 = sand.u32 %s119, 1
        %s455 = scalar_lea.sflag [#allocation4], %s454
        %s456 = sand.u32 %s119, 1
        %s457 = smul.addr %s456, 16
        %s458 = scalar_lea.vmem [#allocation8], %s457
        %s459 = sand.u32 %s27, 1
        %s460 = scalar_lea.sflag [#allocation10], %s459
        %s461 = sand.u32 %s147, 1
        %s462 = smul.addr %s461, 16
        %s463 = scalar_lea.vmem [#allocation9], %s462
        %s464 = sand.u32 %s27, 1
        %s465 = scalar_lea.sflag [#allocation10], %s464
        %s466 = sand.u32 %s175, 1
        %s467 = smul.addr %s466, 16
        %s468 = scalar_lea.vmem [#allocation11], %s467
        // Predicated region
        $region45: #{tpu_custom_call.1} parent=31 // pred_check
          %p469 = pneg %p129
        $region46: #{tpu_custom_call.1} parent=31 // pred_check_branch
          %471 = sbr.rel (%p469) target = $region48
        $region47: #{tpu_custom_call.1} parent=31 // pred_region
          %s472 = smul.u32 2, %s32
          %474 = vsyncadd %s455, 0
          %s475 = smul.addr %s31, 4
          %s476 = sadd.s32 %s472, %s475
          %s477 = smul.addr %s476, 8
          %s478 = scalar_lea.hbm %s3, %s477
          %s479 = sshll.u32 %s458, 4
          %s480 = int_to_ptr.vmem [resolvable:$true] %s479
          %s481 = sshll.u32 %s478, 4
          %s482 = int_to_ptr.hbm [resolvable:$true] %s481
          %487 = dma.vmem_to_hbm [thread:$0]  %s480, 256, %s482, %s455, 128, 128, 8
        $region48: #{tpu_custom_call.1} parent=31 // pred_fallthru
          _
        // Predicated region
        $region49: #{tpu_custom_call.1} parent=31 // pred_check
          %p488 = pneg %p157
        $region50: #{tpu_custom_call.1} parent=31 // pred_check_branch
          %490 = sbr.rel (%p488) target = $region52
        $region51: #{tpu_custom_call.1} parent=31 // pred_region
          %s491 = smul.u32 2, %s32
          %493 = vsyncadd %s460, 0
          %s494 = smul.addr %s31, 4
          %s495 = sadd.s32 %s491, %s494
          %s496 = smul.addr %s495, 8
          %s497 = scalar_lea.hbm %s4, %s496
          %s498 = sshll.u32 %s463, 4
          %s499 = int_to_ptr.vmem [resolvable:$true] %s498
          %s500 = sshll.u32 %s497, 4
          %s501 = int_to_ptr.hbm [resolvable:$true] %s500
          %506 = dma.vmem_to_hbm [thread:$0]  %s499, 256, %s501, %s460, 128, 128, 8
        $region52: #{tpu_custom_call.1} parent=31 // pred_fallthru
          _
        // Predicated region
        $region53: #{tpu_custom_call.1} parent=31 // pred_check
          %p507 = pneg %p185
        $region54: #{tpu_custom_call.1} parent=31 // pred_check_branch
          %509 = sbr.rel (%p507) target = $region56
        $region55: #{tpu_custom_call.1} parent=31 // pred_region
          %s510 = smul.u32 2, %s32
          %512 = vsyncadd %s465, 0
          %s513 = smul.addr %s31, 4
          %s514 = sadd.s32 %s510, %s513
          %s515 = smul.addr %s514, 8
          %s516 = scalar_lea.hbm %s5, %s515
          %s517 = sshll.u32 %s468, 4
          %s518 = int_to_ptr.vmem [resolvable:$true] %s517
          %s519 = sshll.u32 %s516, 4
          %s520 = int_to_ptr.hbm [resolvable:$true] %s519
          %525 = dma.vmem_to_hbm [thread:$0]  %s518, 256, %s520, %s465, 128, 128, 8
        $region56: #{tpu_custom_call.1} parent=31 // pred_fallthru
          _
      $region32: #{tpu_custom_call.1} parent=5 // pred_fallthru
        _
      %p526 = scmp.le.s32.totalorder 2, %s22
      // Predicated region
      $region57: #{tpu_custom_call.1} parent=5 // pred_check
        %p527 = pneg %p526
      $region58: #{tpu_custom_call.1} parent=5 // pred_check_branch
        %529 = sbr.rel (%p527) target = $region60
      $region59: #{tpu_custom_call.1} parent=5 // pred_region
        %s530 = ssub.s32 %s22, 2
        // Predicated region
        $region61: #{tpu_custom_call.1} parent=59 // pred_check
          %p531 = pneg %p135
        $region62: #{tpu_custom_call.1} parent=59 // pred_check_branch
          %533 = sbr.rel (%p531) target = $region64
        $region63: #{tpu_custom_call.1} parent=59 // pred_region
          %s534 = sand.u32 %s120, 1
          %s535 = scalar_lea.sflag [#allocation4], %s534
          %s536 = sand.u32 %s120, 1
          %s537 = smul.addr %s536, 16
          %s538 = scalar_lea.vmem [#allocation8], %s537
          %540 = dma.done %s535, 256
        $region64: #{tpu_custom_call.1} parent=59 // pred_fallthru
          _
        // Predicated region
        $region65: #{tpu_custom_call.1} parent=59 // pred_check
          %p541 = pneg %p163
        $region66: #{tpu_custom_call.1} parent=59 // pred_check_branch
          %543 = sbr.rel (%p541) target = $region68
        $region67: #{tpu_custom_call.1} parent=59 // pred_region
          %s544 = sand.u32 %s28, 1
          %s545 = scalar_lea.sflag [#allocation10], %s544
          %s546 = sand.u32 %s148, 1
          %s547 = smul.addr %s546, 16
          %s548 = scalar_lea.vmem [#allocation9], %s547
          %550 = dma.done %s545, 256
        $region68: #{tpu_custom_call.1} parent=59 // pred_fallthru
          _
        // Predicated region
        $region69: #{tpu_custom_call.1} parent=59 // pred_check
          %p551 = pneg %p191
        $region70: #{tpu_custom_call.1} parent=59 // pred_check_branch
          %553 = sbr.rel (%p551) target = $region72
        $region71: #{tpu_custom_call.1} parent=59 // pred_region
          %s554 = sand.u32 %s28, 1
          %s555 = scalar_lea.sflag [#allocation10], %s554
          %s556 = sand.u32 %s176, 1
          %s557 = smul.addr %s556, 16
          %s558 = scalar_lea.vmem [#allocation11], %s557
          %560 = dma.done %s555, 256
        $region72: #{tpu_custom_call.1} parent=59 // pred_fallthru
          _
      $region60: #{tpu_custom_call.1} parent=5 // pred_fallthru
        _
    $region6: #{tpu_custom_call.1} parent=1 // loop_footer
      %s26 = sadd.s32 1, %s22
    $region7: #{tpu_custom_call.1} parent=1 // loop_footer_branch
      %21 = sbr.rel target = $region3
    $region8: #{tpu_custom_call.1} parent=1 // loop_exit
      _
    %561 = vsyncpa [#allocation3], 1
    %s562 = scalar_lea.sflag [#allocation3], 1
    %563 = vsyncpa %s562, 1
    %564 = vsyncpa [#allocation6], 1
    %565 = vsyncpa [#allocation4], 1
    %s566 = scalar_lea.sflag [#allocation4], 1
    %567 = vsyncpa %s566, 1
    %568 = vsyncpa [#allocation10], 1
    %s569 = scalar_lea.sflag [#allocation10], 1
    %570 = vsyncpa %s569, 1

</llo_original>
